<compile_context>
chip_gen: v5e
topology: v5e:2x2
jax: 0.10.0
libtpu: 0.0.40
codegen_flags: <defaults>
</compile_context>

<pallas_src>
import math
import jax
import jax.numpy as jnp
from jax.experimental import pallas as pl
from jax.experimental.pallas import tpu as pltpu

LANE = 128      # vreg lane width: hidden dim padded to this (matches v5e 128x128 MXU)
SUBLANE = 8     # f32 sublane tile -> batch tile must be a multiple of this
MAX_TILE = 2048  # batch-tile cap: ~1 MiB/activation buffer, far under VMEM limits


def _round_up(x, m):
    return (x + m - 1) // m * m


def _cdiv(a, b):
    return -(-a // b)


def _nbytes(a):
    return a.size * jnp.dtype(a.dtype).itemsize


def mlp_kernel(x_ref, w1_ref, b1_ref, w2_ref, b2_ref, o_ref):
    # Fused hot path on one batch tile: two MXU matmuls + EUP sigmoid/tanh.
    # Accumulation and all element-wise math stay in f32 (v5e has no bf16 VPU/EUP).
    h = jnp.dot(x_ref[...], w1_ref[...], preferred_element_type=jnp.float32)
    a = jax.nn.sigmoid(h + b1_ref[...])                       # F.sigmoid (EUP)
    z = jnp.dot(a.astype(w2_ref.dtype), w2_ref[...],
                preferred_element_type=jnp.float32)
    o_ref[...] = jnp.tanh(z + b2_ref[...]).astype(o_ref.dtype)  # F.tanh (EUP)


def prepare_params(w1, b1, w2, b2, *, compute_dtype=None):
    """One-time parameter preparation (hoisted out of the forward call).

    w1: (in, hid); w2: (hid, out)  -- transposed vs PyTorch nn.Linear so the
    kernel computes x @ W + b.  Biases may be (F,) or (1, F).
    Hidden dim is zero-padded to a multiple of 128 (lane-dense); the matching
    zero rows of w2 cancel the sigmoid(0)=0.5 contribution of padded lanes, so
    results are bit-identical.  Output dim is left unpadded.
    If compute_dtype (e.g. jnp.bfloat16) is given, only the MXU operands
    (w1, w2) are cast; biases stay f32.
    """
    in_f, hid = w1.shape
    hid2, out = w2.shape
    assert hid2 == hid, "w2 must be (hidden, out)"
    b1 = jnp.reshape(jnp.asarray(b1), (1, hid)).astype(jnp.float32)
    b2 = jnp.reshape(jnp.asarray(b2), (1, out)).astype(jnp.float32)

    hid_p = _round_up(hid, LANE)
    w1_p = jnp.pad(w1, ((0, 0), (0, hid_p - hid)))           # extra hidden cols = 0
    b1_p = jnp.pad(b1, ((0, 0), (0, hid_p - hid)))           # extra hidden bias = 0
    w2_p = jnp.pad(w2, ((0, hid_p - hid), (0, 0)))           # zero rows kill sigmoid(0)=0.5

    if compute_dtype is not None:
        w1_p = w1_p.astype(compute_dtype)
        w2_p = w2_p.astype(compute_dtype)
    return w1_p, b1_p, w2_p, b2


def single_net_forward(x, w1_p, b1_p, w2_p, b2, *, out_dtype=jnp.float32):
    """x: (B, in). Parameters must come from prepare_params()."""
    B, in_f = x.shape
    assert w1_p.shape[0] == in_f
    hid_p = w1_p.shape[1]
    out = w2_p.shape[1]
    assert b1_p.shape == (1, hid_p), "b1 must be prepared to shape (1, hidden_padded)"
    assert b2.shape == (1, out), "b2 must be prepared to shape (1, out)"

    # bf16 fast path: match x dtype to the prepared MXU operand dtype.
    if x.dtype != w1_p.dtype:
        x = x.astype(w1_p.dtype)

    # ---- balanced batch tiling (padding <= 7 rows for any B) -------------------
    B8 = _round_up(B, SUBLANE)
    nt = _cdiv(B8, MAX_TILE)
    if B8 >= 1024:
        nt = max(nt, 2)          # v7x: >=2 grid steps so both TensorCores get work
    batch_tile = _round_up(_cdiv(B8, nt), SUBLANE)
    B_pad = nt * batch_tile
    x_p = x if B_pad == B else jnp.pad(x, ((0, B_pad - B), (0, 0)))
    grid = (nt,)

    cost = pl.CostEstimate(
        flops=2 * B_pad * (in_f * hid_p + hid_p * out),
        transcendentals=B_pad * (hid_p + out),
        bytes_accessed=(_nbytes(x_p) + _nbytes(w1_p) + _nbytes(b1_p)
                        + _nbytes(w2_p) + _nbytes(b2)
                        + B_pad * out * jnp.dtype(out_dtype).itemsize),
    )

    out_arr = pl.pallas_call(
        mlp_kernel,
        out_shape=jax.ShapeDtypeStruct((B_pad, out), out_dtype),
        grid=grid,
        in_specs=[
            pl.BlockSpec((batch_tile, in_f), lambda i: (i, 0)),  # batch-tiled activations
            pl.BlockSpec((in_f, hid_p),      lambda i: (0, 0)),  # weights VMEM-resident
            pl.BlockSpec((1, hid_p),         lambda i: (0, 0)),
            pl.BlockSpec((hid_p, out),       lambda i: (0, 0)),  # out dim unpadded (full extent)
            pl.BlockSpec((1, out),           lambda i: (0, 0)),
        ],
        out_specs=pl.BlockSpec((batch_tile, out), lambda i: (i, 0)),
        compiler_params=pltpu.CompilerParams(
            dimension_semantics=("parallel",),   # shard batch grid across TCs (v7x)
        ),
        cost_estimate=cost,
    )(x_p, w1_p, b1_p, w2_p, b2)

    return out_arr[:B]


def init_linear_params(key, fan_in, fan_out):
    """nn.Linear-style uniform(-1/sqrt(fan_in), 1/sqrt(fan_in)) init.
    Weight stored as (fan_in, fan_out) — transposed vs PyTorch."""
    kw, kb = jax.random.split(key)
    bound = 1.0 / math.sqrt(fan_in)
    w = jax.random.uniform(kw, (fan_in, fan_out), jnp.float32, -bound, bound)
    b = jax.random.uniform(kb, (1, fan_out), jnp.float32, -bound, bound)
    return w, b


if __name__ == "__main__":
    input_size = 10
    hidden_size = 32
    output_size = 4
    batch = 8

    key = jax.random.PRNGKey(0)
    k_x, k_fc1, k_fc2 = jax.random.split(key, 3)

    x = jax.random.normal(k_x, (batch, input_size), jnp.float32)
    w1, b1 = init_linear_params(k_fc1, input_size, hidden_size)
    w2, b2 = init_linear_params(k_fc2, hidden_size, output_size)

    # reference in plain JAX on the *unpadded* parameters
    ref = jnp.tanh(jax.nn.sigmoid(x @ w1 + b1) @ w2 + b2)

    # ---- f32 path (one-time parameter prep, then cheap per-call forward) ------
    params = prepare_params(w1, b1, w2, b2)
    out = single_net_forward(x, *params)
    jax.block_until_ready(out)
    assert out.shape == (batch, output_size)
    assert jnp.allclose(out, ref, atol=1e-5), "f32 mismatch vs reference"

    # ---- optional bf16 MXU-operand fast path (v6e/v7x) ------------------------
    params_bf16 = prepare_params(w1, b1, w2, b2, compute_dtype=jnp.bfloat16)
    out_bf16 = single_net_forward(x, *params_bf16)
    jax.block_until_ready(out_bf16)
    assert out_bf16.shape == (batch, output_size)
    assert jnp.allclose(out_bf16, ref, atol=5e-2), "bf16 mismatch vs reference"

    print("KERNEL_OK")
</pallas_src>

<mosaic_0001>
module attributes {stable_mosaic.version = 11 : i64} {
  func.func @mlp_kernel(%arg0: i32, %arg1: memref<8x10xf32, #tpu.memory_space<vmem>>, %arg2: memref<10x128xf32, #tpu.memory_space<vmem>>, %arg3: memref<1x128xf32, #tpu.memory_space<vmem>>, %arg4: memref<128x4xf32, #tpu.memory_space<vmem>>, %arg5: memref<1x4xf32, #tpu.memory_space<vmem>>, %arg6: memref<8x4xf32, #tpu.memory_space<vmem>>) attributes {dimension_semantics = [#tpu.dimension_semantics<parallel>], iteration_bounds = array<i64: 1>, scalar_prefetch = 0 : i64, scratch_operands = 0 : i64, tpu.core_type = #tpu.core_type<tc>, window_params = [{transform_indices = @transform_0, window_bounds = array<i64: 8, 10>}, {pipeline_mode = #tpu.pipeline_mode<synchronous>, transform_indices = @transform_1, window_bounds = array<i64: 10, 128>}, {pipeline_mode = #tpu.pipeline_mode<synchronous>, transform_indices = @transform_2, window_bounds = array<i64: 1, 128>}, {pipeline_mode = #tpu.pipeline_mode<synchronous>, transform_indices = @transform_3, window_bounds = array<i64: 128, 4>}, {pipeline_mode = #tpu.pipeline_mode<synchronous>, transform_indices = @transform_4, window_bounds = array<i64: 1, 4>}, {transform_indices = @transform_5, window_bounds = array<i64: 8, 4>}]} {
    %c0 = arith.constant 0 : index
    %c0_0 = arith.constant 0 : index
    %0 = vector.load %arg1[%c0, %c0_0] : memref<8x10xf32, #tpu.memory_space<vmem>>, vector<8x10xf32>
    %c0_1 = arith.constant 0 : index
    %c0_2 = arith.constant 0 : index
    %1 = vector.load %arg2[%c0_1, %c0_2] : memref<10x128xf32, #tpu.memory_space<vmem>>, vector<10x128xf32>
    %cst = arith.constant dense<0.000000e+00> : vector<8x128xf32>
    %2 = tpu.matmul %0, %1, %cst {dimension_numbers = #tpu.dot_dimension_numbers<[1], [0], [0], [1], [0, 0, 1, 1], [], []>} : vector<8x10xf32>, vector<10x128xf32>, vector<8x128xf32> -> vector<8x128xf32>
    %c0_3 = arith.constant 0 : index
    %c0_4 = arith.constant 0 : index
    %3 = vector.load %arg3[%c0_3, %c0_4] : memref<1x128xf32, #tpu.memory_space<vmem>>, vector<1x128xf32>
    %4 = vector.broadcast %3 : vector<1x128xf32> to vector<8x128xf32>
    %5 = arith.addf %2, %4 : vector<8x128xf32>
    %6 = arith.negf %5 : vector<8x128xf32>
    %7 = math.exp %6 : vector<8x128xf32>
    %cst_5 = arith.constant 1.000000e+00 : f32
    %8 = vector.broadcast %cst_5 : f32 to vector<8x128xf32>
    %9 = arith.addf %8, %7 : vector<8x128xf32>
    %10 = arith.divf %8, %9 : vector<8x128xf32>
    %c0_6 = arith.constant 0 : index
    %c0_7 = arith.constant 0 : index
    %11 = vector.load %arg4[%c0_6, %c0_7] : memref<128x4xf32, #tpu.memory_space<vmem>>, vector<128x4xf32>
    %cst_8 = arith.constant dense<0.000000e+00> : vector<8x4xf32>
    %12 = tpu.matmul %10, %11, %cst_8 {dimension_numbers = #tpu.dot_dimension_numbers<[1], [0], [0], [1], [0, 0, 1, 1], [], []>} : vector<8x128xf32>, vector<128x4xf32>, vector<8x4xf32> -> vector<8x4xf32>
    %c0_9 = arith.constant 0 : index
    %c0_10 = arith.constant 0 : index
    %13 = vector.load %arg5[%c0_9, %c0_10] : memref<1x4xf32, #tpu.memory_space<vmem>>, vector<1x4xf32>
    %14 = vector.broadcast %13 : vector<1x4xf32> to vector<8x4xf32>
    %15 = arith.addf %12, %14 : vector<8x4xf32>
    %16 = math.tanh %15 : vector<8x4xf32>
    %c0_11 = arith.constant 0 : index
    %c0_12 = arith.constant 0 : index
    %17 = vector.load %arg6[%c0_11, %c0_12] : memref<8x4xf32, #tpu.memory_space<vmem>>, vector<8x4xf32>
    tpu.vector_store %arg6[%c0_11, %c0_12], %16 {strides = array<i32>} : memref<8x4xf32, #tpu.memory_space<vmem>>, vector<8x4xf32>,
    return
  }
  func.func @transform_0(%arg0: i32) -> (i32, i32) {
    %c0_i32 = arith.constant 0 : i32
    %c0_i32_0 = arith.constant 0 : i32
    return %arg0, %c0_i32 : i32, i32
  }
  func.func @transform_1(%arg0: i32) -> (i32, i32) {
    %c0_i32 = arith.constant 0 : i32
    %c0_i32_0 = arith.constant 0 : i32
    %c0_i32_1 = arith.constant 0 : i32
    return %c0_i32, %c0_i32_0 : i32, i32
  }
  func.func @transform_2(%arg0: i32) -> (i32, i32) {
    %c0_i32 = arith.constant 0 : i32
    %c0_i32_0 = arith.constant 0 : i32
    %c0_i32_1 = arith.constant 0 : i32
    return %c0_i32, %c0_i32_0 : i32, i32
  }
  func.func @transform_3(%arg0: i32) -> (i32, i32) {
    %c0_i32 = arith.constant 0 : i32
    %c0_i32_0 = arith.constant 0 : i32
    %c0_i32_1 = arith.constant 0 : i32
    return %c0_i32, %c0_i32_0 : i32, i32
  }
  func.func @transform_4(%arg0: i32) -> (i32, i32) {
    %c0_i32 = arith.constant 0 : i32
    %c0_i32_0 = arith.constant 0 : i32
    %c0_i32_1 = arith.constant 0 : i32
    return %c0_i32, %c0_i32_0 : i32, i32
  }
  func.func @transform_5(%arg0: i32) -> (i32, i32) {
    %c0_i32 = arith.constant 0 : i32
    %c0_i32_0 = arith.constant 0 : i32
    return %arg0, %c0_i32 : i32, i32
  }
}

</mosaic_0001>

<llo_original>
// kernel: tpu_custom_call.1
$region0: #{tpu_custom_call.1}
  #allocation0 [shape = 'u32[]', space=smem, size = 0x4, offset = 0x4, fixed_abs, tag = 'smem constant byte address 0x4 - core index']
  #allocation1 [shape = 'u32[72,128]{1,0:T(1,128)}', space=vmem, size = 0x9000, scoped, tag = 'internal scratch']
  %s0 = inlined_call_operand.vmem [shape: f32[8,10], index: 0, kind: input, shape index: {}]
  %s1 = inlined_call_operand.vmem [shape: f32[10,128], index: 1, kind: input, shape index: {}]
  %s2 = inlined_call_operand.vmem [shape: f32[1,128], index: 2, kind: input, shape index: {}]
  %s3 = inlined_call_operand.vmem [shape: f32[128,4], index: 3, kind: input, shape index: {}]
  %s4 = inlined_call_operand.vmem [shape: f32[1,4], index: 4, kind: input, shape index: {}]
  %s5 = inlined_call_operand.vmem [shape: f32[8,4], index: 5, kind: output, shape index: {}]
  %s6 = sld [smem:[#allocation0]]
  $region30: #{tpu_custom_call.1} parent=0
    _
  %s8 = ssub.s32 1, %s6
  %s9 = scalar_select 0, %s8, %s6
  // Predicated region
  $region2: #{tpu_custom_call.1} parent=0 // pred_check
    _
  $region3: #{tpu_custom_call.1} parent=0 // pred_check_branch
    %11 = sbr.rel (0) target = $region5
  $region4: #{tpu_custom_call.1} parent=0 // pred_region
    _
  $region5: #{tpu_custom_call.1} parent=0 // pred_fallthru
    _
  // Predicated region
  $region6: #{tpu_custom_call.1} parent=0 // pred_check
    _
  $region7: #{tpu_custom_call.1} parent=0 // pred_check_branch
    %13 = sbr.rel (0) target = $region9
  $region8: #{tpu_custom_call.1} parent=0 // pred_region
    _
  $region9: #{tpu_custom_call.1} parent=0 // pred_fallthru
    _
  // Predicated region
  $region10: #{tpu_custom_call.1} parent=0 // pred_check
    _
  $region11: #{tpu_custom_call.1} parent=0 // pred_check_branch
    %15 = sbr.rel (0) target = $region13
  $region12: #{tpu_custom_call.1} parent=0 // pred_region
    _
  $region13: #{tpu_custom_call.1} parent=0 // pred_fallthru
    _
  // Predicated region
  $region14: #{tpu_custom_call.1} parent=0 // pred_check
    _
  $region15: #{tpu_custom_call.1} parent=0 // pred_check_branch
    %17 = sbr.rel (0) target = $region17
  $region16: #{tpu_custom_call.1} parent=0 // pred_region
    _
  $region17: #{tpu_custom_call.1} parent=0 // pred_fallthru
    _
  // Predicated region
  $region18: #{tpu_custom_call.1} parent=0 // pred_check
    _
  $region19: #{tpu_custom_call.1} parent=0 // pred_check_branch
    %19 = sbr.rel (0) target = $region21
  $region20: #{tpu_custom_call.1} parent=0 // pred_region
    _
  $region21: #{tpu_custom_call.1} parent=0 // pred_fallthru
    _
  %v20 = vld [vmem:[%s0] sm:$0xff]
  %v21 = vld [vmem:[%s1] sm:$0xff]
  %v22 = vld [vmem:[%s1 + $0x8] sm:$0x3]
  %v23 = vld [vmem:[%s2] sm:$0x1]
  %v25 = vperm.slane %v23, 0
  %vm27 = vcmask 80896
  %v29 = vsel %vm27, %v20, 0
  %vm31 = vcmask 1041408
  %v33 = vsel %vm31, %v22, 0
  %35 = vmatpush.msra.mxu0 0.0
  %36 = vmatpush.msra.mxu0 0.0
  %37 = vmatpush.msra.mxu0 0.0
  %38 = vmatpush.msra.mxu0 0.0
  %39 = vmatpush.msra.mxu0 0.0
  %40 = vmatpush.msra.mxu0 0.0
  %41 = vmatpush.msra.mxu0 0.0
  %42 = vmatpush.msra.mxu0 0.0
  %43 = vmatpush.msra.mxu0 0.0
  %44 = vmatpush.msra.mxu0 0.0
  %45 = vmatpush.msra.mxu0 0.0
  %46 = vmatpush.msra.mxu0 0.0
  %47 = vmatpush.msra.mxu0 0.0
  %48 = vmatpush.msra.mxu0 0.0
  %49 = vmatpush.msra.mxu0 %v33
  %50 = vmatpush.msra.mxu0 %v21
  %51 = vmatmul.f32.gmra.mxu0 %v29
  %v52 = vpop.f32.mrf.mxu0
  %v53 = vadd.f32 %v25, %v52
  %54 = vdwg.mxu0
  %v55 = vxor.u32 %v53, 2147483648
  %v56 = vmul.f32 %v55, 1.442695
  %v57 = vpow.pop %v56
  %v58 = vadd.f32 %v57, 1.0
  %v59 = vrcp.pop %v58
  %v60 = vmul.f32 %v58, %v59
  %v61 = vsub.f32 1.0, %v60
  %v62 = vmul.f32 %v59, %v61
  %v63 = vadd.f32 %v59, %v62
  %vm64 = vweird.f32 %v58
  %vm65 = vweird.f32 %v59
  %vm66 = vmor %vm64, %vm65
  %v67 = vsel %vm66, %v59, %v63
  %v68 = vand.u32 2147483647, %v58
  %vm69 = vcmp.eq.f32.partialorder %v68, 8.507059e+37
  %v70 = vand.u32 %v58, 2147483648
  %v71 = vor.u32 1.1754944e-38, %v70
  %v72 = vsel %vm69, %v71, %v67
  %v73 = vmul.f32 1.0, %v72
  %v74 = vld [vmem:[%s3] sm:$0xff]
  %v75 = vld [vmem:[%s3 + $0x8] sm:$0xff]
  %v76 = vld [vmem:[%s3 + $0x10] sm:$0xff]
  %v77 = vld [vmem:[%s3 + $0x18] sm:$0xff]
  %v78 = vld [vmem:[%s3 + $0x20] sm:$0xff]
  %v79 = vld [vmem:[%s3 + $0x28] sm:$0xff]
  %v80 = vld [vmem:[%s3 + $0x30] sm:$0xff]
  %v81 = vld [vmem:[%s3 + $0x38] sm:$0xff]
  %v82 = vld [vmem:[%s3 + $0x40] sm:$0xff]
  %v83 = vld [vmem:[%s3 + $0x48] sm:$0xff]
  %v84 = vld [vmem:[%s3 + $0x50] sm:$0xff]
  %v85 = vld [vmem:[%s3 + $0x58] sm:$0xff]
  %v86 = vld [vmem:[%s3 + $0x60] sm:$0xff]
  %v87 = vld [vmem:[%s3 + $0x68] sm:$0xff]
  %v88 = vld [vmem:[%s3 + $0x70] sm:$0xff]
  %v89 = vld [vmem:[%s3 + $0x78] sm:$0xff]
  %v90 = vld [vmem:[%s4] sm:$0x1]
  %v92 = vperm.slane %v90, 0
  %94 = vmatpush.msra.mxu0 %v89
  %95 = vmatpush.msra.mxu0 %v88
  %96 = vmatpush.msra.mxu0 %v87
  %97 = vmatpush.msra.mxu0 %v86
  %98 = vmatpush.msra.mxu0 %v85
  %99 = vmatpush.msra.mxu0 %v84
  %100 = vmatpush.msra.mxu0 %v83
  %101 = vmatpush.msra.mxu0 %v82
  %102 = vmatpush.msra.mxu0 %v81
  %103 = vmatpush.msra.mxu0 %v80
  %104 = vmatpush.msra.mxu0 %v79
  %105 = vmatpush.msra.mxu0 %v78
  %106 = vmatpush.msra.mxu0 %v77
  %107 = vmatpush.msra.mxu0 %v76
  %108 = vmatpush.msra.mxu0 %v75
  %109 = vmatpush.msra.mxu0 %v74
  %110 = vmatmul.f32.gmra.mxu0 %v73
  %v111 = vpop.f32.mrf.mxu0
  %v112 = vadd.f32 %v92, %v111
  %113 = vdwg.mxu0
  %v114 = vtanh.pop %v112
  %vm115 = vcmask 31744
  %116 = vst.msk [vmem:[%s5] sm:$0xff] %vm115, %v114
  // Predicated region
  $region22: #{tpu_custom_call.1} parent=0 // pred_check
    _
  $region23: #{tpu_custom_call.1} parent=0 // pred_check_branch
    %118 = sbr.rel (0) target = $region25
  $region24: #{tpu_custom_call.1} parent=0 // pred_region
    _
  $region25: #{tpu_custom_call.1} parent=0 // pred_fallthru
    _
  // Predicated region
  $region26: #{tpu_custom_call.1} parent=0 // pred_check
    _
  $region27: #{tpu_custom_call.1} parent=0 // pred_check_branch
    %120 = sbr.rel (0) target = $region29
  $region28: #{tpu_custom_call.1} parent=0 // pred_region
    _
  $region29: #{tpu_custom_call.1} parent=0 // pred_fallthru
    _

</llo_original>
